<compile_context>
chip_gen: v7x
topology: tpu7x:2x2x1
jax: 0.10.0
libtpu: 0.0.40
codegen_flags: <defaults>
</compile_context>

<pallas_src>
import functools

import jax
import jax.numpy as jnp
from jax import lax
from jax.experimental import pallas as pl
from jax.experimental.pallas import tpu as pltpu

BN_EPS = 1e-5
NEG_SLOPE = 0.01          # nn.LeakyReLU() default
K_IN = 28 * 28            # 784, contraction dim of layer 1 (left unpadded in HBM)
FP = 128                  # lane-dense padded feature width for 8 / 8 / 10


def _round_up(x, m):
    return ((x + m - 1) // m) * m


def _pad2(a, shape):
    out = jnp.zeros(shape, a.dtype)
    return out.at[:a.shape[0], :a.shape[1]].set(a)


# --------------------------------------------------------------------------
# in-kernel helpers
# --------------------------------------------------------------------------
def _masked_feature_stats(h, grid_i, tb, b_real):
    """Per-feature [sum; sum_sq] over the valid (non-remainder) rows of this
    batch tile.  Returns (2, FP) f32."""
    row = grid_i * tb + lax.broadcasted_iota(jnp.int32, (tb, 1), 0)
    hm = jnp.where(row < b_real, h, 0.0)
    s = jnp.sum(hm, axis=0, keepdims=True)
    ss = jnp.sum(hm * hm, axis=0, keepdims=True)
    return jnp.concatenate([s, ss], axis=0)


def _affine_leaky(h, aff_ref):
    """Folded BatchNorm (h * scale + shift) followed by LeakyReLU."""
    hn = h * aff_ref[0:1, :] + aff_ref[1:2, :]
    return jnp.where(hn >= 0, hn, NEG_SLOPE * hn)


def _bn_leaky_train(h, g, be):
    """Full-batch training-mode BatchNorm1d (biased variance) + LeakyReLU."""
    m = jnp.mean(h, axis=0, keepdims=True)
    v = jnp.mean((h - m) * (h - m), axis=0, keepdims=True)
    hn = (h - m) * lax.rsqrt(v + BN_EPS) * g + be
    return jnp.where(hn >= 0, hn, NEG_SLOPE * hn)


# --------------------------------------------------------------------------
# kernels
# --------------------------------------------------------------------------
def _fused_kernel(x_ref, w1_ref, b1_ref, g1_ref, be1_ref, w2_ref, b2_ref,
                  g2_ref, be2_ref, w3_ref, b3_ref, o_ref, *, compute_dtype):
    """Whole forward pass for a batch that fits in VMEM (single call, no grid)."""
    x = x_ref[...].astype(compute_dtype)
    h = jnp.dot(x, w1_ref[...], preferred_element_type=jnp.float32) + b1_ref[...]
    h = _bn_leaky_train(h, g1_ref[...], be1_ref[...])
    h = jnp.dot(h, w2_ref[...], preferred_element_type=jnp.float32) + b2_ref[...]
    h = _bn_leaky_train(h, g2_ref[...], be2_ref[...])
    o_ref[...] = jnp.dot(h, w3_ref[...],
                         preferred_element_type=jnp.float32) + b3_ref[...]


def _linear_stats_kernel(x_ref, w_ref, b_ref, h_ref, stats_ref, *,
                         b_real, tb, compute_dtype):
    """Phase 1: Linear(784->8) + per-tile partial BN stats of h1."""
    i = pl.program_id(0)
    h = jnp.dot(x_ref[...].astype(compute_dtype), w_ref[...],
                preferred_element_type=jnp.float32) + b_ref[...]
    h_ref[...] = h.astype(h_ref.dtype)
    stats_ref[...] = _masked_feature_stats(h, i, tb, b_real)[None]


def _affine_act_linear_stats_kernel(h_ref, aff_ref, w_ref, b_ref,
                                    h_out_ref, stats_ref, *, b_real, tb):
    """Phase 2: BN1 (folded affine) + LeakyReLU + Linear(8->8) + partial stats."""
    i = pl.program_id(0)
    a = _affine_leaky(h_ref[...].astype(jnp.float32), aff_ref)
    h2 = jnp.dot(a, w_ref[...], preferred_element_type=jnp.float32) + b_ref[...]
    h_out_ref[...] = h2.astype(h_out_ref.dtype)
    stats_ref[...] = _masked_feature_stats(h2, i, tb, b_real)[None]


def _affine_act_linear_kernel(h_ref, aff_ref, w_ref, b_ref, o_ref):
    """Phase 3: BN2 (folded affine) + LeakyReLU + Linear(8->10)."""
    a = _affine_leaky(h_ref[...].astype(jnp.float32), aff_ref)
    o_ref[...] = jnp.dot(a, w_ref[...],
                         preferred_element_type=jnp.float32) + b_ref[...]


# --------------------------------------------------------------------------
# wrapper
# --------------------------------------------------------------------------
def prepare_params(params, *, layer1_dtype=jnp.bfloat16):
    """One-time padding of weights/biases/BN params to lane-dense (..., 128)
    layouts; layer-1 weight optionally pre-cast to bf16 (f32 accumulation is
    always used in the kernels).  Call once, reuse across forward calls."""
    w1, b1, g1, be1, w2, b2, g2, be2, w3, b3 = params
    return {
        "w1": _pad2(w1, (K_IN, FP)).astype(layer1_dtype),
        "b1": _pad2(b1, (1, FP)),
        "g1": _pad2(g1, (1, FP)),
        "be1": _pad2(be1, (1, FP)),
        "w2": _pad2(w2, (FP, FP)),
        "b2": _pad2(b2, (1, FP)),
        "g2": _pad2(g2, (1, FP)),
        "be2": _pad2(be2, (1, FP)),
        "w3": _pad2(w3, (FP, FP)),
        "b3": _pad2(b3, (1, FP)),
    }


def _bn_affine(partial_stats, gamma, beta, b_real):
    """Fold summed batch stats + BN params into per-feature (scale, shift).
    Padded features have var == 0 and gamma == 0 -> scale = shift = 0."""
    s = jnp.sum(partial_stats, axis=0)                        # (2, FP)
    n = jnp.float32(b_real)
    mean = s[0:1, :] / n
    var = jnp.maximum(s[1:2, :] / n - mean * mean, 0.0)       # biased (torch train)
    scale = gamma * lax.rsqrt(var + BN_EPS)                   # (1, FP)
    shift = beta - mean * scale                               # (1, FP)
    return jnp.concatenate([scale, shift], axis=0)            # (2, FP)


def _default_tile_b1():
    # Double-buffered (TB1, 784) f32 x tile: 1024 -> ~6.4 MiB (fits v5e's 16 MiB
    # scoped default), 2048 -> ~12.8 MiB (use on big-VMEM parts).
    try:
        vmem = pltpu.get_tpu_info().vmem_capacity_bytes
    except Exception:
        vmem = 0
    return 2048 if vmem >= (100 << 20) else 1024


def model_11_forward(x_nchw, prepped, *, tile_b1=None, tile_b2=4096,
                     fuse_max_batch=1024):
    """x_nchw: (B, 1, 28, 28).  prepped: output of prepare_params().
    Returns (B, 10) float32 logits.  BatchNorm runs in training mode (batch
    statistics), matching a freshly constructed nn.Module."""
    B = x_nchw.shape[0]
    x = x_nchw.reshape(B, -1)
    if x.dtype != jnp.float32:
        x = x.astype(jnp.float32)

    compute_dtype = prepped["w1"].dtype                      # bf16 or f32
    h_dtype = jnp.bfloat16 if compute_dtype == jnp.bfloat16 else jnp.float32

    # ----------------- fused single-call path (small batches) ----------------
    if B <= fuse_max_batch:
        out = pl.pallas_call(
            functools.partial(_fused_kernel, compute_dtype=compute_dtype),
            out_shape=jax.ShapeDtypeStruct((B, FP), jnp.float32),
        )(x, prepped["w1"], prepped["b1"], prepped["g1"], prepped["be1"],
          prepped["w2"], prepped["b2"], prepped["g2"], prepped["be2"],
          prepped["w3"], prepped["b3"])
        return out[:, :10]

    # ---------------------------- tiled 3-phase path -------------------------
    if tile_b1 is None:
        tile_b1 = _default_tile_b1()
    TB1 = min(_round_up(tile_b1, 16), _round_up(B, 16))
    TB2 = min(_round_up(tile_b2, 16), _round_up(B, 16))
    nb1 = pl.cdiv(B, TB1)
    nb2 = pl.cdiv(B, TB2)

    par = pltpu.CompilerParams(dimension_semantics=("parallel",))
    res = lambda a: pl.BlockSpec(a.shape, lambda i: (0,) * a.ndim)  # VMEM resident

    h1_spec = pl.BlockSpec((TB1, FP), lambda i: (i, 0))
    h2_spec = pl.BlockSpec((TB2, FP), lambda i: (i, 0))

    # phase 1: Linear1 + per-tile h1 stats (x read unpadded; remainder masked)
    h1, p_stats1 = pl.pallas_call(
        functools.partial(_linear_stats_kernel, b_real=B, tb=TB1,
                          compute_dtype=compute_dtype),
        grid=(nb1,),
        in_specs=[pl.BlockSpec((TB1, K_IN), lambda i: (i, 0)),
                  res(prepped["w1"]), res(prepped["b1"])],
        out_specs=[h1_spec, pl.BlockSpec((1, 2, FP), lambda i: (i, 0, 0))],
        out_shape=[jax.ShapeDtypeStruct((B, FP), h_dtype),
                   jax.ShapeDtypeStruct((nb1, 2, FP), jnp.float32)],
        compiler_params=par,
    )(x, prepped["w1"], prepped["b1"])

    aff1 = _bn_affine(p_stats1, prepped["g1"], prepped["be1"], B)

    # phase 2: BN1 + LeakyReLU + Linear2 + per-tile h2 stats
    h2, p_stats2 = pl.pallas_call(
        functools.partial(_affine_act_linear_stats_kernel, b_real=B, tb=TB2),
        grid=(nb2,),
        in_specs=[h2_spec, res(aff1), res(prepped["w2"]), res(prepped["b2"])],
        out_specs=[h2_spec, pl.BlockSpec((1, 2, FP), lambda i: (i, 0, 0))],
        out_shape=[jax.ShapeDtypeStruct((B, FP), h_dtype),
                   jax.ShapeDtypeStruct((nb2, 2, FP), jnp.float32)],
        compiler_params=par,
    )(h1, aff1, prepped["w2"], prepped["b2"])

    aff2 = _bn_affine(p_stats2, prepped["g2"], prepped["be2"], B)

    # phase 3: BN2 + LeakyReLU + Linear3
    out = pl.pallas_call(
        _affine_act_linear_kernel,
        grid=(nb2,),
        in_specs=[h2_spec, res(aff2), res(prepped["w3"]), res(prepped["b3"])],
        out_specs=pl.BlockSpec((TB2, FP), lambda i: (i, 0)),
        out_shape=jax.ShapeDtypeStruct((B, FP), jnp.float32),
        compiler_params=par,
    )(h2, aff2, prepped["w3"], prepped["b3"])

    return out[:, :10]


# --------------------------------------------------------------------------
# params / reference
# --------------------------------------------------------------------------
def init_params(key):
    """model_11 shapes: Linear(784,8), BN(8), Linear(8,8), BN(8), Linear(8,10).
    Linear init: U(-1/sqrt(fan_in), 1/sqrt(fan_in)); BN: gamma=1, beta=0.
    Weights stored as (in, out); biases / BN params as (1, out)."""
    dims = [(784, 8), (8, 8), (8, 10)]
    lin = []
    for fan_in, fan_out in dims:
        key, kw, kb = jax.random.split(key, 3)
        bound = 1.0 / jnp.sqrt(float(fan_in))
        w = jax.random.uniform(kw, (fan_in, fan_out), jnp.float32, -bound, bound)
        b = jax.random.uniform(kb, (1, fan_out), jnp.float32, -bound, bound)
        lin.append((w, b))
    (w1, b1), (w2, b2), (w3, b3) = lin
    g1, be1 = jnp.ones((1, 8), jnp.float32), jnp.zeros((1, 8), jnp.float32)
    g2, be2 = jnp.ones((1, 8), jnp.float32), jnp.zeros((1, 8), jnp.float32)
    return (w1, b1, g1, be1, w2, b2, g2, be2, w3, b3)


def _reference(x_nchw, params):
    x = x_nchw.reshape(x_nchw.shape[0], -1)
    w1, b1, g1, be1, w2, b2, g2, be2, w3, b3 = params

    def bn_leaky(h, g, be):
        m = jnp.mean(h, axis=0, keepdims=True)
        v = jnp.mean((h - m) ** 2, axis=0, keepdims=True)
        hn = (h - m) * lax.rsqrt(v + BN_EPS) * g + be
        return jnp.where(hn >= 0, hn, NEG_SLOPE * hn)

    h = bn_leaky(x @ w1 + b1, g1, be1)
    h = bn_leaky(h @ w2 + b2, g2, be2)
    return h @ w3 + b3


if __name__ == "__main__":
    key = jax.random.PRNGKey(0)
    key, kx = jax.random.split(key)

    B = 8
    x = jax.random.normal(kx, (B, 1, 28, 28), jnp.float32)   # NCHW, MNIST-sized
    params = init_params(key)
    ref = jax.block_until_ready(_reference(x, params))

    fwd = jax.jit(model_11_forward,
                  static_argnames=("tile_b1", "tile_b2", "fuse_max_batch"))

    # 1) exact-f32 fused (single-call) path
    prepped_f32 = prepare_params(params, layer1_dtype=jnp.float32)
    out = jax.block_until_ready(fwd(x, prepped_f32))
    assert out.shape == (B, 10) and out.dtype == jnp.float32
    assert jnp.allclose(out, ref, rtol=1e-3, atol=1e-3)

    # 2) default bf16-layer-1 fused path (f32 accumulation; looser tolerance)
    prepped_bf16 = prepare_params(params)
    out_bf = jax.block_until_ready(fwd(x, prepped_bf16))
    assert jnp.allclose(out_bf, ref, rtol=5e-2, atol=5e-2)

    # 3) tiled 3-phase path, forced with small tiles so the grid has several
    #    steps plus a partial remainder tile (300 = 2*128 + 44)
    B2 = 300
    key, kx2 = jax.random.split(key)
    x2 = jax.random.normal(kx2, (B2, 1, 28, 28), jnp.float32)
    ref2 = jax.block_until_ready(_reference(x2, params))

    out_t = jax.block_until_ready(
        fwd(x2, prepped_f32, tile_b1=128, tile_b2=128, fuse_max_batch=0))
    assert out_t.shape == (B2, 10)
    assert jnp.allclose(out_t, ref2, rtol=1e-3, atol=1e-3)

    out_t_bf = jax.block_until_ready(
        fwd(x2, prepped_bf16, tile_b1=128, tile_b2=128, fuse_max_batch=0))
    assert jnp.allclose(out_t_bf, ref2, rtol=5e-2, atol=5e-2)

    print("KERNEL_OK")
</pallas_src>

<mosaic_0001>
module attributes {stable_mosaic.version = 11 : i64} {
  func.func @_fused_kernel(%arg0: memref<8x784xf32, #tpu.memory_space<vmem>>, %arg1: memref<784x128xf32, #tpu.memory_space<vmem>>, %arg2: memref<1x128xf32, #tpu.memory_space<vmem>>, %arg3: memref<1x128xf32, #tpu.memory_space<vmem>>, %arg4: memref<1x128xf32, #tpu.memory_space<vmem>>, %arg5: memref<128x128xf32, #tpu.memory_space<vmem>>, %arg6: memref<1x128xf32, #tpu.memory_space<vmem>>, %arg7: memref<1x128xf32, #tpu.memory_space<vmem>>, %arg8: memref<1x128xf32, #tpu.memory_space<vmem>>, %arg9: memref<128x128xf32, #tpu.memory_space<vmem>>, %arg10: memref<1x128xf32, #tpu.memory_space<vmem>>, %arg11: memref<8x128xf32, #tpu.memory_space<vmem>>) attributes {dimension_semantics = [], scalar_prefetch = 0 : i64, scratch_operands = 0 : i64, tpu.core_type = #tpu.core_type<tc>} {
    %c0 = arith.constant 0 : index
    %c0_0 = arith.constant 0 : index
    %0 = vector.load %arg0[%c0, %c0_0] : memref<8x784xf32, #tpu.memory_space<vmem>>, vector<8x784xf32>
    %c0_1 = arith.constant 0 : index
    %c0_2 = arith.constant 0 : index
    %1 = vector.load %arg1[%c0_1, %c0_2] : memref<784x128xf32, #tpu.memory_space<vmem>>, vector<784x128xf32>
    %cst = arith.constant dense<0.000000e+00> : vector<8x128xf32>
    %2 = tpu.matmul %0, %1, %cst {dimension_numbers = #tpu.dot_dimension_numbers<[1], [0], [0], [1], [0, 0, 1, 1], [], []>} : vector<8x784xf32>, vector<784x128xf32>, vector<8x128xf32> -> vector<8x128xf32>
    %c0_3 = arith.constant 0 : index
    %c0_4 = arith.constant 0 : index
    %3 = vector.load %arg2[%c0_3, %c0_4] : memref<1x128xf32, #tpu.memory_space<vmem>>, vector<1x128xf32>
    %4 = vector.broadcast %3 : vector<1x128xf32> to vector<8x128xf32>
    %5 = arith.addf %2, %4 : vector<8x128xf32>
    %c0_5 = arith.constant 0 : index
    %c0_6 = arith.constant 0 : index
    %6 = vector.load %arg3[%c0_5, %c0_6] : memref<1x128xf32, #tpu.memory_space<vmem>>, vector<1x128xf32>
    %c0_7 = arith.constant 0 : index
    %c0_8 = arith.constant 0 : index
    %7 = vector.load %arg4[%c0_7, %c0_8] : memref<1x128xf32, #tpu.memory_space<vmem>>, vector<1x128xf32>
    %cst_9 = arith.constant dense<0.000000e+00> : vector<128xf32>
    %8 = vector.multi_reduction <add>, %5, %cst_9 [0] : vector<8x128xf32> to vector<128xf32>
    %9 = vector.shape_cast %8 : vector<128xf32> to vector<1x128xf32>
    %cst_10 = arith.constant 8.000000e+00 : f32
    %10 = vector.broadcast %cst_10 : f32 to vector<1x128xf32>
    %11 = arith.divf %9, %10 : vector<1x128xf32>
    %12 = vector.broadcast %11 : vector<1x128xf32> to vector<8x128xf32>
    %13 = arith.subf %5, %12 : vector<8x128xf32>
    %14 = vector.broadcast %11 : vector<1x128xf32> to vector<8x128xf32>
    %15 = arith.subf %5, %14 : vector<8x128xf32>
    %16 = arith.mulf %13, %15 : vector<8x128xf32>
    %cst_11 = arith.constant dense<0.000000e+00> : vector<128xf32>
    %17 = vector.multi_reduction <add>, %16, %cst_11 [0] : vector<8x128xf32> to vector<128xf32>
    %18 = vector.shape_cast %17 : vector<128xf32> to vector<1x128xf32>
    %cst_12 = arith.constant 8.000000e+00 : f32
    %19 = vector.broadcast %cst_12 : f32 to vector<1x128xf32>
    %20 = arith.divf %18, %19 : vector<1x128xf32>
    %21 = vector.broadcast %11 : vector<1x128xf32> to vector<8x128xf32>
    %22 = arith.subf %5, %21 : vector<8x128xf32>
    %cst_13 = arith.constant 9.99999974E-6 : f32
    %23 = vector.broadcast %cst_13 : f32 to vector<1x128xf32>
    %24 = arith.addf %20, %23 : vector<1x128xf32>
    %25 = math.rsqrt %24 : vector<1x128xf32>
    %26 = vector.broadcast %25 : vector<1x128xf32> to vector<8x128xf32>
    %27 = arith.mulf %22, %26 : vector<8x128xf32>
    %28 = vector.broadcast %6 : vector<1x128xf32> to vector<8x128xf32>
    %29 = arith.mulf %27, %28 : vector<8x128xf32>
    %30 = vector.broadcast %7 : vector<1x128xf32> to vector<8x128xf32>
    %31 = arith.addf %29, %30 : vector<8x128xf32>
    %cst_14 = arith.constant 0.000000e+00 : f32
    %32 = vector.broadcast %cst_14 : f32 to vector<8x128xf32>
    %33 = arith.cmpf oge, %31, %32 : vector<8x128xf32>
    %cst_15 = arith.constant 0.00999999977 : f32
    %34 = vector.broadcast %cst_15 : f32 to vector<8x128xf32>
    %35 = arith.mulf %34, %31 : vector<8x128xf32>
    %36 = arith.select %33, %31, %35 : vector<8x128xi1>, vector<8x128xf32>
    %c0_16 = arith.constant 0 : index
    %c0_17 = arith.constant 0 : index
    %37 = vector.load %arg5[%c0_16, %c0_17] : memref<128x128xf32, #tpu.memory_space<vmem>>, vector<128x128xf32>
    %cst_18 = arith.constant dense<0.000000e+00> : vector<8x128xf32>
    %38 = tpu.matmul %36, %37, %cst_18 {dimension_numbers = #tpu.dot_dimension_numbers<[1], [0], [0], [1], [0, 0, 1, 1], [], []>} : vector<8x128xf32>, vector<128x128xf32>, vector<8x128xf32> -> vector<8x128xf32>
    %c0_19 = arith.constant 0 : index
    %c0_20 = arith.constant 0 : index
    %39 = vector.load %arg6[%c0_19, %c0_20] : memref<1x128xf32, #tpu.memory_space<vmem>>, vector<1x128xf32>
    %40 = vector.broadcast %39 : vector<1x128xf32> to vector<8x128xf32>
    %41 = arith.addf %38, %40 : vector<8x128xf32>
    %c0_21 = arith.constant 0 : index
    %c0_22 = arith.constant 0 : index
    %42 = vector.load %arg7[%c0_21, %c0_22] : memref<1x128xf32, #tpu.memory_space<vmem>>, vector<1x128xf32>
    %c0_23 = arith.constant 0 : index
    %c0_24 = arith.constant 0 : index
    %43 = vector.load %arg8[%c0_23, %c0_24] : memref<1x128xf32, #tpu.memory_space<vmem>>, vector<1x128xf32>
    %cst_25 = arith.constant dense<0.000000e+00> : vector<128xf32>
    %44 = vector.multi_reduction <add>, %41, %cst_25 [0] : vector<8x128xf32> to vector<128xf32>
    %45 = vector.shape_cast %44 : vector<128xf32> to vector<1x128xf32>
    %cst_26 = arith.constant 8.000000e+00 : f32
    %46 = vector.broadcast %cst_26 : f32 to vector<1x128xf32>
    %47 = arith.divf %45, %46 : vector<1x128xf32>
    %48 = vector.broadcast %47 : vector<1x128xf32> to vector<8x128xf32>
    %49 = arith.subf %41, %48 : vector<8x128xf32>
    %50 = vector.broadcast %47 : vector<1x128xf32> to vector<8x128xf32>
    %51 = arith.subf %41, %50 : vector<8x128xf32>
    %52 = arith.mulf %49, %51 : vector<8x128xf32>
    %cst_27 = arith.constant dense<0.000000e+00> : vector<128xf32>
    %53 = vector.multi_reduction <add>, %52, %cst_27 [0] : vector<8x128xf32> to vector<128xf32>
    %54 = vector.shape_cast %53 : vector<128xf32> to vector<1x128xf32>
    %cst_28 = arith.constant 8.000000e+00 : f32
    %55 = vector.broadcast %cst_28 : f32 to vector<1x128xf32>
    %56 = arith.divf %54, %55 : vector<1x128xf32>
    %57 = vector.broadcast %47 : vector<1x128xf32> to vector<8x128xf32>
    %58 = arith.subf %41, %57 : vector<8x128xf32>
    %cst_29 = arith.constant 9.99999974E-6 : f32
    %59 = vector.broadcast %cst_29 : f32 to vector<1x128xf32>
    %60 = arith.addf %56, %59 : vector<1x128xf32>
    %61 = math.rsqrt %60 : vector<1x128xf32>
    %62 = vector.broadcast %61 : vector<1x128xf32> to vector<8x128xf32>
    %63 = arith.mulf %58, %62 : vector<8x128xf32>
    %64 = vector.broadcast %42 : vector<1x128xf32> to vector<8x128xf32>
    %65 = arith.mulf %63, %64 : vector<8x128xf32>
    %66 = vector.broadcast %43 : vector<1x128xf32> to vector<8x128xf32>
    %67 = arith.addf %65, %66 : vector<8x128xf32>
    %cst_30 = arith.constant 0.000000e+00 : f32
    %68 = vector.broadcast %cst_30 : f32 to vector<8x128xf32>
    %69 = arith.cmpf oge, %67, %68 : vector<8x128xf32>
    %cst_31 = arith.constant 0.00999999977 : f32
    %70 = vector.broadcast %cst_31 : f32 to vector<8x128xf32>
    %71 = arith.mulf %70, %67 : vector<8x128xf32>
    %72 = arith.select %69, %67, %71 : vector<8x128xi1>, vector<8x128xf32>
    %c0_32 = arith.constant 0 : index
    %c0_33 = arith.constant 0 : index
    %73 = vector.load %arg9[%c0_32, %c0_33] : memref<128x128xf32, #tpu.memory_space<vmem>>, vector<128x128xf32>
    %cst_34 = arith.constant dense<0.000000e+00> : vector<8x128xf32>
    %74 = tpu.matmul %72, %73, %cst_34 {dimension_numbers = #tpu.dot_dimension_numbers<[1], [0], [0], [1], [0, 0, 1, 1], [], []>} : vector<8x128xf32>, vector<128x128xf32>, vector<8x128xf32> -> vector<8x128xf32>
    %c0_35 = arith.constant 0 : index
    %c0_36 = arith.constant 0 : index
    %75 = vector.load %arg10[%c0_35, %c0_36] : memref<1x128xf32, #tpu.memory_space<vmem>>, vector<1x128xf32>
    %76 = vector.broadcast %75 : vector<1x128xf32> to vector<8x128xf32>
    %77 = arith.addf %74, %76 : vector<8x128xf32>
    %c0_37 = arith.constant 0 : index
    %c0_38 = arith.constant 0 : index
    %78 = vector.load %arg11[%c0_37, %c0_38] : memref<8x128xf32, #tpu.memory_space<vmem>>, vector<8x128xf32>
    tpu.vector_store %arg11[%c0_37, %c0_38], %77 {strides = array<i32>} : memref<8x128xf32, #tpu.memory_space<vmem>>, vector<8x128xf32>,
    return
  }
}

</mosaic_0001>

<llo_original>
// kernel: model_11_forward.1
$region0: #{model_11_forward.1}
  #allocation0 [shape = 'u32[]', space=smem, size = 0x4, offset = 0x4, fixed_abs, tag = 'smem constant byte address 0x4 - core index']
  #allocation1 [shape = 'u32[144,128]{1,0:T(1,128)}', space=vmem, size = 0x12000, scoped, tag = 'internal scratch']
  %s0 = inlined_call_operand.vmem [shape: f32[8,784], index: 0, kind: input, shape index: {}]
  %s1 = inlined_call_operand.vmem [shape: f32[784,128], index: 1, kind: input, shape index: {}]
  %s2 = inlined_call_operand.vmem [shape: f32[1,128], index: 2, kind: input, shape index: {}]
  %s3 = inlined_call_operand.vmem [shape: f32[1,128], index: 3, kind: input, shape index: {}]
  %s4 = inlined_call_operand.vmem [shape: f32[1,128], index: 4, kind: input, shape index: {}]
  %s5 = inlined_call_operand.hbm [shape: f32[128,128], index: 5, kind: input, shape index: {}]
  %s6 = inlined_call_operand.vmem [shape: f32[1,128], index: 6, kind: input, shape index: {}]
  %s7 = inlined_call_operand.vmem [shape: f32[1,128], index: 7, kind: input, shape index: {}]
  %s8 = inlined_call_operand.vmem [shape: f32[1,128], index: 8, kind: input, shape index: {}]
  %s9 = inlined_call_operand.hbm [shape: f32[128,128], index: 9, kind: input, shape index: {}]
  %s10 = inlined_call_operand.vmem [shape: f32[1,128], index: 10, kind: input, shape index: {}]
  %s11 = inlined_call_operand.hbm [shape: f32[8,128], index: 11, kind: output, shape index: {}]
  %s12 = sld [smem:[#allocation0]]
  $region62: #{model_11_forward.1} parent=0
    _
  %s14 = ssub.s32 1, %s12
  %s15 = scalar_select 0, %s14, %s12
  $region1: #{model_11_forward.1} parent=0
    #allocation2 [shape = 'u8[65536]{0}', space=vmem, size = 0x10000, scoped, tag = 'input window, operand 5, single buffered']
    #allocation3 [shape = 's32[1]{0}', space=sflag, size = 0x4, scoped, tag = 'scoped memory for model_11_forward.1']
    #allocation4 [shape = 's32[1]{0}', space=sflag, size = 0x4, scoped, tag = 'scoped memory for model_11_forward.1']
    #allocation5 [shape = 'u8[65536]{0}', space=vmem, size = 0x10000, scoped, tag = 'input window, operand 9, single buffered']
    #allocation6 [shape = 's32[1]{0}', space=sflag, size = 0x4, scoped, tag = 'scoped memory for model_11_forward.1']
    #allocation7 [shape = 'u8[4096]{0}', space=vmem, size = 0x1000, scoped, tag = 'output window, operand 0, single buffered']
    %16 = vsyncpa [#allocation3], 0
    %17 = vsyncpa [#allocation6], 0
    %18 = vsyncpa [#allocation4], 0
    // Predicated region
    $region2: #{model_11_forward.1} parent=1 // pred_check
      _
    $region3: #{model_11_forward.1} parent=1 // pred_check_branch
      %20 = sbr.rel (0) target = $region5
    $region4: #{model_11_forward.1} parent=1 // pred_region
      _
    $region5: #{model_11_forward.1} parent=1 // pred_fallthru
      _
    // Predicated region
    $region6: #{model_11_forward.1} parent=1 // pred_check
      _
    $region7: #{model_11_forward.1} parent=1 // pred_check_branch
      %22 = sbr.rel (0) target = $region9
    $region8: #{model_11_forward.1} parent=1 // pred_region
      _
    $region9: #{model_11_forward.1} parent=1 // pred_fallthru
      _
    // Predicated region
    $region10: #{model_11_forward.1} parent=1 // pred_check
      _
    $region11: #{model_11_forward.1} parent=1 // pred_check_branch
      %24 = sbr.rel (0) target = $region13
    $region12: #{model_11_forward.1} parent=1 // pred_region
      _
    $region13: #{model_11_forward.1} parent=1 // pred_fallthru
      _
    // Predicated region
    $region14: #{model_11_forward.1} parent=1 // pred_check
      _
    $region15: #{model_11_forward.1} parent=1 // pred_check_branch
      %26 = sbr.rel (0) target = $region17
    $region16: #{model_11_forward.1} parent=1 // pred_region
      _
    $region17: #{model_11_forward.1} parent=1 // pred_fallthru
      _
    // Predicated region
    $region18: #{model_11_forward.1} parent=1 // pred_check
      _
    $region19: #{model_11_forward.1} parent=1 // pred_check_branch
      %28 = sbr.rel (0) target = $region21
    $region20: #{model_11_forward.1} parent=1 // pred_region
      _
    $region21: #{model_11_forward.1} parent=1 // pred_fallthru
      _
    // Predicated region
    $region22: #{model_11_forward.1} parent=1 // pred_check
      _
    $region23: #{model_11_forward.1} parent=1 // pred_check_branch
      %30 = sbr.rel (0) target = $region25
    $region24: #{model_11_forward.1} parent=1 // pred_region
      %s32 = ssub.s32 2048, 2048
      %33 = vsyncadd [#allocation3], %s32
      %s34 = sshll.u32 [#allocation2], 4
      %s35 = int_to_ptr.vmem [resolvable:$true] %s34
      %40 = dma.hbm_to_vmem [thread:$0]  %s5, 2048, %s35, [#allocation3], 128, 128, 8
    $region25: #{model_11_forward.1} parent=1 // pred_fallthru
      _
    // Predicated region
    $region26: #{model_11_forward.1} parent=1 // pred_check
      _
    $region27: #{model_11_forward.1} parent=1 // pred_check_branch
      %42 = sbr.rel (0) target = $region29
    $region28: #{model_11_forward.1} parent=1 // pred_region
      _
    $region29: #{model_11_forward.1} parent=1 // pred_fallthru
      _
    // Predicated region
    $region30: #{model_11_forward.1} parent=1 // pred_check
      _
    $region31: #{model_11_forward.1} parent=1 // pred_check_branch
      %44 = sbr.rel (0) target = $region33
    $region32: #{model_11_forward.1} parent=1 // pred_region
      _
    $region33: #{model_11_forward.1} parent=1 // pred_fallthru
      _
    // Predicated region
    $region34: #{model_11_forward.1} parent=1 // pred_check
      _
    $region35: #{model_11_forward.1} parent=1 // pred_check_branch
      %46 = sbr.rel (0) target = $region37
    $region36: #{model_11_forward.1} parent=1 // pred_region
      _
    $region37: #{model_11_forward.1} parent=1 // pred_fallthru
      _
    // Predicated region
    $region38: #{model_11_forward.1} parent=1 // pred_check
      _
    $region39: #{model_11_forward.1} parent=1 // pred_check_branch
      %48 = sbr.rel (0) target = $region41
    $region40: #{model_11_forward.1} parent=1 // pred_region
      %s50 = ssub.s32 2048, 2048
      %51 = vsyncadd [#allocation6], %s50
      %s52 = sshll.u32 [#allocation5], 4
      %s53 = int_to_ptr.vmem [resolvable:$true] %s52
      %58 = dma.hbm_to_vmem [thread:$0]  %s9, 2048, %s53, [#allocation6], 128, 128, 8
    $region41: #{model_11_forward.1} parent=1 // pred_fallthru
      _
    // Predicated region
    $region42: #{model_11_forward.1} parent=1 // pred_check
      _
    $region43: #{model_11_forward.1} parent=1 // pred_check_branch
      %60 = sbr.rel (0) target = $region45
    $region44: #{model_11_forward.1} parent=1 // pred_region
      _
    $region45: #{model_11_forward.1} parent=1 // pred_fallthru
      _
    // Predicated region
    $region46: #{model_11_forward.1} parent=1 // pred_check
      _
    $region47: #{model_11_forward.1} parent=1 // pred_check_branch
      %62 = sbr.rel (0) target = $region49
    $region48: #{model_11_forward.1} parent=1 // pred_region
      %63 = dma.done [#allocation3], 2048
    $region49: #{model_11_forward.1} parent=1 // pred_fallthru
      _
    // Predicated region
    $region50: #{model_11_forward.1} parent=1 // pred_check
      _
    $region51: #{model_11_forward.1} parent=1 // pred_check_branch
      %65 = sbr.rel (0) target = $region53
    $region52: #{model_11_forward.1} parent=1 // pred_region
      %66 = dma.done [#allocation6], 2048
    $region53: #{model_11_forward.1} parent=1 // pred_fallthru
      _
    %v67 = vld [vmem:[%s0] sm:$0xff]
    %v68 = vld [vmem:[%s0 + $0x8] sm:$0xff]
    %v69 = vld [vmem:[%s0 + $0x10] sm:$0xff]
    %v70 = vld [vmem:[%s0 + $0x18] sm:$0xff]
    %v71 = vld [vmem:[%s0 + $0x20] sm:$0xff]
    %v72 = vld [vmem:[%s0 + $0x28] sm:$0xff]
    %v73 = vld [vmem:[%s0 + $0x30] sm:$0xff]
    %v74 = vld [vmem:[%s1] sm:$0xff]
    %v75 = vld [vmem:[%s1 + $0x8] sm:$0xff]
    %v76 = vld [vmem:[%s1 + $0x10] sm:$0xff]
    %v77 = vld [vmem:[%s1 + $0x18] sm:$0xff]
    %v78 = vld [vmem:[%s1 + $0x20] sm:$0xff]
    %v79 = vld [vmem:[%s1 + $0x28] sm:$0xff]
    %v80 = vld [vmem:[%s1 + $0x30] sm:$0xff]
    %v81 = vld [vmem:[%s1 + $0x38] sm:$0xff]
    %v82 = vld [vmem:[%s1 + $0x40] sm:$0xff]
    %v83 = vld [vmem:[%s1 + $0x48] sm:$0xff]
    %v84 = vld [vmem:[%s1 + $0x50] sm:$0xff]
    %v85 = vld [vmem:[%s1 + $0x58] sm:$0xff]
    %v86 = vld [vmem:[%s1 + $0x60] sm:$0xff]
    %v87 = vld [vmem:[%s1 + $0x68] sm:$0xff]
    %v88 = vld [vmem:[%s1 + $0x70] sm:$0xff]
    %v89 = vld [vmem:[%s1 + $0x78] sm:$0xff]
    %v90 = vld [vmem:[%s1 + $0x80] sm:$0xff]
    %v91 = vld [vmem:[%s1 + $0x88] sm:$0xff]
    %v92 = vld [vmem:[%s1 + $0x90] sm:$0xff]
    %v93 = vld [vmem:[%s1 + $0x98] sm:$0xff]
    %v94 = vld [vmem:[%s1 + $0xa0] sm:$0xff]
    %v95 = vld [vmem:[%s1 + $0xa8] sm:$0xff]
    %v96 = vld [vmem:[%s1 + $0xb0] sm:$0xff]
    %v97 = vld [vmem:[%s1 + $0xb8] sm:$0xff]
    %v98 = vld [vmem:[%s1 + $0xc0] sm:$0xff]
    %v99 = vld [vmem:[%s1 + $0xc8] sm:$0xff]
    %v100 = vld [vmem:[%s1 + $0xd0] sm:$0xff]
    %v101 = vld [vmem:[%s1 + $0xd8] sm:$0xff]
    %v102 = vld [vmem:[%s1 + $0xe0] sm:$0xff]
    %v103 = vld [vmem:[%s1 + $0xe8] sm:$0xff]
    %v104 = vld [vmem:[%s1 + $0xf0] sm:$0xff]
    %v105 = vld [vmem:[%s1 + $0xf8] sm:$0xff]
    %v106 = vld [vmem:[%s1 + $0x100] sm:$0xff]
    %v107 = vld [vmem:[%s1 + $0x108] sm:$0xff]
    %v108 = vld [vmem:[%s1 + $0x110] sm:$0xff]
    %v109 = vld [vmem:[%s1 + $0x118] sm:$0xff]
    %v110 = vld [vmem:[%s1 + $0x120] sm:$0xff]
    %v111 = vld [vmem:[%s1 + $0x128] sm:$0xff]
    %v112 = vld [vmem:[%s1 + $0x130] sm:$0xff]
    %v113 = vld [vmem:[%s1 + $0x138] sm:$0xff]
    %v114 = vld [vmem:[%s1 + $0x140] sm:$0xff]
    %v115 = vld [vmem:[%s1 + $0x148] sm:$0xff]
    %v116 = vld [vmem:[%s1 + $0x150] sm:$0xff]
    %v117 = vld [vmem:[%s1 + $0x158] sm:$0xff]
    %v118 = vld [vmem:[%s1 + $0x160] sm:$0xff]
    %v119 = vld [vmem:[%s1 + $0x168] sm:$0xff]
    %v120 = vld [vmem:[%s1 + $0x170] sm:$0xff]
    %v121 = vld [vmem:[%s1 + $0x178] sm:$0xff]
    %v122 = vld [vmem:[%s1 + $0x180] sm:$0xff]
    %v123 = vld [vmem:[%s1 + $0x188] sm:$0xff]
    %v124 = vld [vmem:[%s1 + $0x190] sm:$0xff]
    %v125 = vld [vmem:[%s1 + $0x198] sm:$0xff]
    %v126 = vld [vmem:[%s1 + $0x1a0] sm:$0xff]
    %v127 = vld [vmem:[%s1 + $0x1a8] sm:$0xff]
    %v128 = vld [vmem:[%s1 + $0x1b0] sm:$0xff]
    %v129 = vld [vmem:[%s1 + $0x1b8] sm:$0xff]
    %v130 = vld [vmem:[%s1 + $0x1c0] sm:$0xff]
    %v131 = vld [vmem:[%s1 + $0x1c8] sm:$0xff]
    %v132 = vld [vmem:[%s1 + $0x1d0] sm:$0xff]
    %v133 = vld [vmem:[%s1 + $0x1d8] sm:$0xff]
    %v134 = vld [vmem:[%s1 + $0x1e0] sm:$0xff]
    %v135 = vld [vmem:[%s1 + $0x1e8] sm:$0xff]
    %v136 = vld [vmem:[%s1 + $0x1f0] sm:$0xff]
    %v137 = vld [vmem:[%s1 + $0x1f8] sm:$0xff]
    %v138 = vld [vmem:[%s1 + $0x200] sm:$0xff]
    %v139 = vld [vmem:[%s1 + $0x208] sm:$0xff]
    %v140 = vld [vmem:[%s1 + $0x210] sm:$0xff]
    %v141 = vld [vmem:[%s1 + $0x218] sm:$0xff]
    %v142 = vld [vmem:[%s1 + $0x220] sm:$0xff]
    %v143 = vld [vmem:[%s1 + $0x228] sm:$0xff]
    %v144 = vld [vmem:[%s1 + $0x230] sm:$0xff]
    %v145 = vld [vmem:[%s1 + $0x238] sm:$0xff]
    %v146 = vld [vmem:[%s1 + $0x240] sm:$0xff]
    %v147 = vld [vmem:[%s1 + $0x248] sm:$0xff]
    %v148 = vld [vmem:[%s1 + $0x250] sm:$0xff]
    %v149 = vld [vmem:[%s1 + $0x258] sm:$0xff]
    %v150 = vld [vmem:[%s1 + $0x260] sm:$0xff]
    %v151 = vld [vmem:[%s1 + $0x268] sm:$0xff]
    %v152 = vld [vmem:[%s1 + $0x270] sm:$0xff]
    %v153 = vld [vmem:[%s1 + $0x278] sm:$0xff]
    %v154 = vld [vmem:[%s1 + $0x280] sm:$0xff]
    %v155 = vld [vmem:[%s1 + $0x288] sm:$0xff]
    %v156 = vld [vmem:[%s1 + $0x290] sm:$0xff]
    %v157 = vld [vmem:[%s1 + $0x298] sm:$0xff]
    %v158 = vld [vmem:[%s1 + $0x2a0] sm:$0xff]
    %v159 = vld [vmem:[%s1 + $0x2a8] sm:$0xff]
    %v160 = vld [vmem:[%s1 + $0x2b0] sm:$0xff]
    %v161 = vld [vmem:[%s1 + $0x2b8] sm:$0xff]
    %v162 = vld [vmem:[%s1 + $0x2c0] sm:$0xff]
    %v163 = vld [vmem:[%s1 + $0x2c8] sm:$0xff]
    %v164 = vld [vmem:[%s1 + $0x2d0] sm:$0xff]
    %v165 = vld [vmem:[%s1 + $0x2d8] sm:$0xff]
    %v166 = vld [vmem:[%s1 + $0x2e0] sm:$0xff]
    %v167 = vld [vmem:[%s1 + $0x2e8] sm:$0xff]
    %v168 = vld [vmem:[%s1 + $0x2f0] sm:$0xff]
    %v169 = vld [vmem:[%s1 + $0x2f8] sm:$0xff]
    %v170 = vld [vmem:[%s1 + $0x300] sm:$0xff]
    %v171 = vld [vmem:[%s1 + $0x308] sm:$0xff]
    %v172 = vld [vmem:[%s2] sm:$0x1]
    %v174 = vlaneseq
    %v175 = vshrl.u32 %v174, 7
    %v176 = vsub.s32 0, %v175
    %v177 = vrot.slane %v172, %v176
    %vm179 = vcmask 130048
    %v181 = vsel %vm179, %v73, 0
    %183 = vmatprep.subr.mxu0 0.0
    %184 = vmatpush1.msra.mxu0 %v74
    %185 = vmatprep.subr.mxu0 0.0
    %186 = vmatpush1.msra.mxu0 %v75
    %187 = vmatprep.subr.mxu0 0.0
    %188 = vmatpush1.msra.mxu0 %v76
    %189 = vmatprep.subr.mxu0 0.0
    %190 = vmatpush1.msra.mxu0 %v77
    %191 = vmatprep.subr.mxu0 0.0
    %192 = vmatpush1.msra.mxu0 %v78
    %193 = vmatprep.subr.mxu0 0.0
    %194 = vmatpush1.msra.mxu0 %v79
    %195 = vmatprep.subr.mxu0 0.0
    %196 = vmatpush1.msra.mxu0 %v80
    %197 = vmatprep.subr.mxu0 0.0
    %198 = vmatpush1.msra.mxu0 %v81
    %199 = vmatprep.subr.mxu0 0.0
    %200 = vmatpush1.msra.mxu0 %v82
    %201 = vmatprep.subr.mxu0 0.0
    %202 = vmatpush1.msra.mxu0 %v83
    %203 = vmatprep.subr.mxu0 0.0
    %204 = vmatpush1.msra.mxu0 %v84
    %205 = vmatprep.subr.mxu0 0.0
    %206 = vmatpush1.msra.mxu0 %v85
    %207 = vmatprep.subr.mxu0 0.0
    %208 = vmatpush1.msra.mxu0 %v86
    %209 = vmatprep.subr.mxu0 0.0
    %210 = vmatpush1.msra.mxu0 %v87
    %211 = vmatprep.subr.mxu0 0.0
    %212 = vmatpush1.msra.mxu0 %v88
    %213 = vmatprep.subr.mxu0 0.0
    %214 = vmatpush1.msra.mxu0 %v89
    %215 = vmatprep.subr.mxu0 0.0
    %216 = vmatpush1.msra.mxu0 %v90
    %217 = vmatprep.subr.mxu0 0.0
    %218 = vmatpush1.msra.mxu0 %v91
    %219 = vmatprep.subr.mxu0 0.0
    %220 = vmatpush1.msra.mxu0 %v92
    %221 = vmatprep.subr.mxu0 0.0
    %222 = vmatpush1.msra.mxu0 %v93
    %223 = vmatprep.subr.mxu0 0.0
    %224 = vmatpush1.msra.mxu0 %v94
    %225 = vmatprep.subr.mxu0 0.0
    %226 = vmatpush1.msra.mxu0 %v95
    %227 = vmatprep.subr.mxu0 0.0
    %228 = vmatpush1.msra.mxu0 %v96
    %229 = vmatprep.subr.mxu0 0.0
    %230 = vmatpush1.msra.mxu0 %v97
    %231 = vmatprep.subr.mxu0 0.0
    %232 = vmatpush1.msra.mxu0 %v98
    %233 = vmatprep.subr.mxu0 0.0
    %234 = vmatpush1.msra.mxu0 %v99
    %235 = vmatprep.subr.mxu0 0.0
    %236 = vmatpush1.msra.mxu0 %v100
    %237 = vmatprep.subr.mxu0 0.0
    %238 = vmatpush1.msra.mxu0 %v101
    %239 = vmatprep.subr.mxu0 0.0
    %240 = vmatpush1.msra.mxu0 %v102
    %241 = vmatprep.subr.mxu0 0.0
    %242 = vmatpush1.msra.mxu0 %v103
    %243 = vmatprep.subr.mxu0 0.0
    %244 = vmatpush1.msra.mxu0 %v104
    %245 = vmatprep.subr.mxu0 0.0
    %246 = vmatpush1.msra.mxu0 %v105
    %247 = vmatprep.mubr.f32.mxu0 %v68
    %248 = vmatmul.mubr.f32.gmra.mrb[0].mxu0 %v67
    %v249 = vpop.f32.mrb[0].mxu0
    %v250 = vadd.f32 %v177, %v249
    %v251 = vpop.f32.mrb[0].mxu0
    %252 = vdwg.mxu0
    %253 = vmatprep.subr.mxu0 0.0
    %254 = vmatpush1.msra.mxu0 %v106
    %255 = vmatprep.subr.mxu0 0.0
    %256 = vmatpush1.msra.mxu0 %v107
    %257 = vmatprep.subr.mxu0 0.0
    %258 = vmatpush1.msra.mxu0 %v108
    %259 = vmatprep.subr.mxu0 0.0
    %260 = vmatpush1.msra.mxu0 %v109
    %261 = vmatprep.subr.mxu0 0.0
    %262 = vmatpush1.msra.mxu0 %v110
    %263 = vmatprep.subr.mxu0 0.0
    %264 = vmatpush1.msra.mxu0 %v111
    %265 = vmatprep.subr.mxu0 0.0
    %266 = vmatpush1.msra.mxu0 %v112
    %267 = vmatprep.subr.mxu0 0.0
    %268 = vmatpush1.msra.mxu0 %v113
    %269 = vmatprep.subr.mxu0 0.0
    %270 = vmatpush1.msra.mxu0 %v114
    %271 = vmatprep.subr.mxu0 0.0
    %272 = vmatpush1.msra.mxu0 %v115
    %273 = vmatprep.subr.mxu0 0.0
    %274 = vmatpush1.msra.mxu0 %v116
    %275 = vmatprep.subr.mxu0 0.0
    %276 = vmatpush1.msra.mxu0 %v117
    %277 = vmatprep.subr.mxu0 0.0
    %278 = vmatpush1.msra.mxu0 %v118
    %279 = vmatprep.subr.mxu0 0.0
    %280 = vmatpush1.msra.mxu0 %v119
    %281 = vmatprep.subr.mxu0 0.0
    %282 = vmatpush1.msra.mxu0 %v120
    %283 = vmatprep.subr.mxu0 0.0
    %284 = vmatpush1.msra.mxu0 %v121
    %285 = vmatprep.subr.mxu0 0.0
    %286 = vmatpush1.msra.mxu0 %v122
    %287 = vmatprep.subr.mxu0 0.0
    %288 = vmatpush1.msra.mxu0 %v123
    %289 = vmatprep.subr.mxu0 0.0
    %290 = vmatpush1.msra.mxu0 %v124
    %291 = vmatprep.subr.mxu0 0.0
    %292 = vmatpush1.msra.mxu0 %v125
    %293 = vmatprep.subr.mxu0 0.0
    %294 = vmatpush1.msra.mxu0 %v126
    %295 = vmatprep.subr.mxu0 0.0
    %296 = vmatpush1.msra.mxu0 %v127
    %297 = vmatprep.subr.mxu0 0.0
    %298 = vmatpush1.msra.mxu0 %v128
    %299 = vmatprep.subr.mxu0 0.0
    %300 = vmatpush1.msra.mxu0 %v129
    %301 = vmatprep.subr.mxu0 0.0
    %302 = vmatpush1.msra.mxu0 %v130
    %303 = vmatprep.subr.mxu0 0.0
    %304 = vmatpush1.msra.mxu0 %v131
    %305 = vmatprep.subr.mxu0 0.0
    %306 = vmatpush1.msra.mxu0 %v132
    %307 = vmatprep.subr.mxu0 0.0
    %308 = vmatpush1.msra.mxu0 %v133
    %309 = vmatprep.subr.mxu0 0.0
    %310 = vmatpush1.msra.mxu0 %v134
    %311 = vmatprep.subr.mxu0 0.0
    %312 = vmatpush1.msra.mxu0 %v135
    %313 = vmatprep.subr.mxu0 0.0
    %314 = vmatpush1.msra.mxu0 %v136
    %315 = vmatprep.subr.mxu0 0.0
    %316 = vmatpush1.msra.mxu0 %v137
    %317 = vmatprep.mubr.f32.mxu0 %v70
    %318 = vmatmul.mubr.f32.gmra.mrb[0].mxu0 %v69
    %v319 = vpop.f32.mrb[0].mxu0
    %v320 = vadd.f32 %v250, %v319
    %v321 = vpop.f32.mrb[0].mxu0
    %322 = vdwg.mxu0
    %323 = vmatprep.subr.mxu0 0.0
    %324 = vmatpush1.msra.mxu0 %v138
    %325 = vmatprep.subr.mxu0 0.0
    %326 = vmatpush1.msra.mxu0 %v139
    %327 = vmatprep.subr.mxu0 0.0
    %328 = vmatpush1.msra.mxu0 %v140
    %329 = vmatprep.subr.mxu0 0.0
    %330 = vmatpush1.msra.mxu0 %v141
    %331 = vmatprep.subr.mxu0 0.0
    %332 = vmatpush1.msra.mxu0 %v142
    %333 = vmatprep.subr.mxu0 0.0
    %334 = vmatpush1.msra.mxu0 %v143
    %335 = vmatprep.subr.mxu0 0.0
    %336 = vmatpush1.msra.mxu0 %v144
    %337 = vmatprep.subr.mxu0 0.0
    %338 = vmatpush1.msra.mxu0 %v145
    %339 = vmatprep.subr.mxu0 0.0
    %340 = vmatpush1.msra.mxu0 %v146
    %341 = vmatprep.subr.mxu0 0.0
    %342 = vmatpush1.msra.mxu0 %v147
    %343 = vmatprep.subr.mxu0 0.0
    %344 = vmatpush1.msra.mxu0 %v148
    %345 = vmatprep.subr.mxu0 0.0
    %346 = vmatpush1.msra.mxu0 %v149
    %347 = vmatprep.subr.mxu0 0.0
    %348 = vmatpush1.msra.mxu0 %v150
    %349 = vmatprep.subr.mxu0 0.0
    %350 = vmatpush1.msra.mxu0 %v151
    %351 = vmatprep.subr.mxu0 0.0
    %352 = vmatpush1.msra.mxu0 %v152
    %353 = vmatprep.subr.mxu0 0.0
    %354 = vmatpush1.msra.mxu0 %v153
    %355 = vmatprep.subr.mxu0 0.0
    %356 = vmatpush1.msra.mxu0 %v154
    %357 = vmatprep.subr.mxu0 0.0
    %358 = vmatpush1.msra.mxu0 %v155
    %359 = vmatprep.subr.mxu0 0.0
    %360 = vmatpush1.msra.mxu0 %v156
    %361 = vmatprep.subr.mxu0 0.0
    %362 = vmatpush1.msra.mxu0 %v157
    %363 = vmatprep.subr.mxu0 0.0
    %364 = vmatpush1.msra.mxu0 %v158
    %365 = vmatprep.subr.mxu0 0.0
    %366 = vmatpush1.msra.mxu0 %v159
    %367 = vmatprep.subr.mxu0 0.0
    %368 = vmatpush1.msra.mxu0 %v160
    %369 = vmatprep.subr.mxu0 0.0
    %370 = vmatpush1.msra.mxu0 %v161
    %371 = vmatprep.subr.mxu0 0.0
    %372 = vmatpush1.msra.mxu0 %v162
    %373 = vmatprep.subr.mxu0 0.0
    %374 = vmatpush1.msra.mxu0 %v163
    %375 = vmatprep.subr.mxu0 0.0
    %376 = vmatpush1.msra.mxu0 %v164
    %377 = vmatprep.subr.mxu0 0.0
    %378 = vmatpush1.msra.mxu0 %v165
    %379 = vmatprep.subr.mxu0 0.0
    %380 = vmatpush1.msra.mxu0 %v166
    %381 = vmatprep.subr.mxu0 0.0
    %382 = vmatpush1.msra.mxu0 %v167
    %383 = vmatprep.subr.mxu0 0.0
    %384 = vmatpush1.msra.mxu0 %v168
    %385 = vmatprep.subr.mxu0 0.0
    %386 = vmatpush1.msra.mxu0 %v169
    %387 = vmatprep.mubr.f32.mxu0 %v72
    %388 = vmatmul.mubr.f32.gmra.mrb[0].mxu0 %v71
    %v389 = vpop.f32.mrb[0].mxu0
    %v390 = vadd.f32 %v320, %v389
    %v391 = vpop.f32.mrb[0].mxu0
    %392 = vdwg.mxu0
    %393 = vmatprep.subr.mxu0 0.0
    %394 = vmatpush1.msra.mxu0 %v170
    %395 = vmatprep.subr.mxu0 0.0
    %396 = vmatpush1.msra.mxu0 %v171
    %397 = vmatprep.subr.mxu0 0.0
    %398 = vmatpush1.msra.mxu0 0.0
    %399 = vmatprep.subr.mxu0 0.0
    %400 = vmatpush1.msra.mxu0 0.0
    %401 = vmatprep.subr.mxu0 0.0
    %402 = vmatpush1.msra.mxu0 0.0
    %403 = vmatprep.subr.mxu0 0.0
    %404 = vmatpush1.msra.mxu0 0.0
    %405 = vmatprep.subr.mxu0 0.0
    %406 = vmatpush1.msra.mxu0 0.0
    %407 = vmatprep.subr.mxu0 0.0
    %408 = vmatpush1.msra.mxu0 0.0
    %409 = vmatprep.subr.mxu0 0.0
    %410 = vmatpush1.msra.mxu0 0.0
    %411 = vmatprep.subr.mxu0 0.0
    %412 = vmatpush1.msra.mxu0 0.0
    %413 = vmatprep.subr.mxu0 0.0
    %414 = vmatpush1.msra.mxu0 0.0
    %415 = vmatprep.subr.mxu0 0.0
    %416 = vmatpush1.msra.mxu0 0.0
    %417 = vmatprep.subr.mxu0 0.0
    %418 = vmatpush1.msra.mxu0 0.0
    %419 = vmatprep.subr.mxu0 0.0
    %420 = vmatpush1.msra.mxu0 0.0
    %421 = vmatprep.subr.mxu0 0.0
    %422 = vmatpush1.msra.mxu0 0.0
    %423 = vmatprep.subr.mxu0 0.0
    %424 = vmatpush1.msra.mxu0 0.0
    %425 = vmatprep.subr.mxu0 0.0
    %426 = vmatpush1.msra.mxu0 0.0
    %427 = vmatprep.subr.mxu0 0.0
    %428 = vmatpush1.msra.mxu0 0.0
    %429 = vmatprep.subr.mxu0 0.0
    %430 = vmatpush1.msra.mxu0 0.0
    %431 = vmatprep.subr.mxu0 0.0
    %432 = vmatpush1.msra.mxu0 0.0
    %433 = vmatprep.subr.mxu0 0.0
    %434 = vmatpush1.msra.mxu0 0.0
    %435 = vmatprep.subr.mxu0 0.0
    %436 = vmatpush1.msra.mxu0 0.0
    %437 = vmatprep.subr.mxu0 0.0
    %438 = vmatpush1.msra.mxu0 0.0
    %439 = vmatprep.subr.mxu0 0.0
    %440 = vmatpush1.msra.mxu0 0.0
    %441 = vmatprep.subr.mxu0 0.0
    %442 = vmatpush1.msra.mxu0 0.0
    %443 = vmatprep.subr.mxu0 0.0
    %444 = vmatpush1.msra.mxu0 0.0
    %445 = vmatprep.subr.mxu0 0.0
    %446 = vmatpush1.msra.mxu0 0.0
    %447 = vmatprep.subr.mxu0 0.0
    %448 = vmatpush1.msra.mxu0 0.0
    %449 = vmatprep.subr.mxu0 0.0
    %450 = vmatpush1.msra.mxu0 0.0
    %451 = vmatprep.subr.mxu0 0.0
    %452 = vmatpush1.msra.mxu0 0.0
    %453 = vmatprep.subr.mxu0 0.0
    %454 = vmatpush1.msra.mxu0 0.0
    %455 = vmatprep.subr.mxu0 0.0
    %456 = vmatpush1.msra.mxu0 0.0
    %457 = vmatprep.mubr.f32.mxu0 0.0
    %458 = vmatmul.mubr.f32.gmra.mrb[0].mxu0 %v181
    %v459 = vpop.f32.mrb[0].mxu0
    %v460 = vadd.f32 %v390, %v459
    %v461 = vpop.f32.mrb[0].mxu0
    %462 = vdwg.mxu0
    %v463 = vld [vmem:[%s3] sm:$0x1]
    %v464 = vld [vmem:[%s4] sm:$0x1]
    %v465 = vrot.slane %v460, 4
    %v466 = vadd.f32 %v460, %v465
    %v467 = vrot.slane %v466, 2
    %v468 = vadd.f32 %v466, %v467
    %v469 = vrot.slane %v468, 1
    %v470 = vadd.f32 %v468, %v469
    %v471 = vrcp.pop 8.0
    %v472 = vmul.f32 %v470, %v471
    %v473 = vsub.f32 %v460, %v472
    %v474 = vmul.f32 %v473, %v473
    %v475 = vrot.slane %v474, 4
    %v476 = vadd.f32 %v474, %v475
    %v477 = vrot.slane %v476, 2
    %v478 = vadd.f32 %v476, %v477
    %v479 = vrot.slane %v478, 1
    %v480 = vadd.f32 %v478, %v479
    %v481 = vmul.f32 %v480, %v471
    %v482 = vadd.f32 %v481, 1e-05
    %v483 = vrsqrt.pop %v482
    %v484 = vmul.f32 %v473, %v483
    %v486 = vlaneseq
    %v487 = vshrl.u32 %v486, 7
    %v488 = vsub.s32 0, %v487
    %v489 = vrot.slane %v463, %v488
    %v491 = vmul.f32 %v484, %v489
    %v493 = vlaneseq
    %v494 = vshrl.u32 %v493, 7
    %v495 = vsub.s32 0, %v494
    %v496 = vrot.slane %v464, %v495
    %v498 = vadd.f32 %v491, %v496
    %vm499 = vcmp.ge.f32.partialorder %v498, 0.0
    %v500 = vmul.f32 %v498, 0.01
    %v501 = vsel %vm499, %v498, %v500
    %v502 = vld [vmem:[#allocation2] sm:$0xff]
    %v503 = vld [vmem:[#allocation2 + $0x8] sm:$0xff]
    %v504 = vld [vmem:[#allocation2 + $0x10] sm:$0xff]
    %v505 = vld [vmem:[#allocation2 + $0x18] sm:$0xff]
    %v506 = vld [vmem:[#allocation2 + $0x20] sm:$0xff]
    %v507 = vld [vmem:[#allocation2 + $0x28] sm:$0xff]
    %v508 = vld [vmem:[#allocation2 + $0x30] sm:$0xff]
    %v509 = vld [vmem:[#allocation2 + $0x38] sm:$0xff]
    %v510 = vld [vmem:[#allocation2 + $0x40] sm:$0xff]
    %v511 = vld [vmem:[#allocation2 + $0x48] sm:$0xff]
    %v512 = vld [vmem:[#allocation2 + $0x50] sm:$0xff]
    %v513 = vld [vmem:[#allocation2 + $0x58] sm:$0xff]
    %v514 = vld [vmem:[#allocation2 + $0x60] sm:$0xff]
    %v515 = vld [vmem:[#allocation2 + $0x68] sm:$0xff]
    %v516 = vld [vmem:[#allocation2 + $0x70] sm:$0xff]
    %v517 = vld [vmem:[#allocation2 + $0x78] sm:$0xff]
    %v518 = vld [vmem:[%s6] sm:$0x1]
    %v520 = vlaneseq
    %v521 = vshrl.u32 %v520, 7
    %v522 = vsub.s32 0, %v521
    %v523 = vrot.slane %v518, %v522
    %525 = vmatprep.subr.mxu0 0.0
    %526 = vmatpush1.msra.mxu0 %v502
    %527 = vmatprep.subr.mxu0 0.0
    %528 = vmatpush1.msra.mxu0 %v503
    %529 = vmatprep.subr.mxu0 0.0
    %530 = vmatpush1.msra.mxu0 %v504
    %531 = vmatprep.subr.mxu0 0.0
    %532 = vmatpush1.msra.mxu0 %v505
    %533 = vmatprep.subr.mxu0 0.0
    %534 = vmatpush1.msra.mxu0 %v506
    %535 = vmatprep.subr.mxu0 0.0
    %536 = vmatpush1.msra.mxu0 %v507
    %537 = vmatprep.subr.mxu0 0.0
    %538 = vmatpush1.msra.mxu0 %v508
    %539 = vmatprep.subr.mxu0 0.0
    %540 = vmatpush1.msra.mxu0 %v509
    %541 = vmatprep.subr.mxu0 0.0
    %542 = vmatpush1.msra.mxu0 %v510
    %543 = vmatprep.subr.mxu0 0.0
    %544 = vmatpush1.msra.mxu0 %v511
    %545 = vmatprep.subr.mxu0 0.0
    %546 = vmatpush1.msra.mxu0 %v512
    %547 = vmatprep.subr.mxu0 0.0
    %548 = vmatpush1.msra.mxu0 %v513
    %549 = vmatprep.subr.mxu0 0.0
    %550 = vmatpush1.msra.mxu0 %v514
    %551 = vmatprep.subr.mxu0 0.0
    %552 = vmatpush1.msra.mxu0 %v515
    %553 = vmatprep.subr.mxu0 0.0
    %554 = vmatpush1.msra.mxu0 %v516
    %555 = vmatprep.subr.mxu0 0.0
    %556 = vmatpush1.msra.mxu0 %v517
    %557 = vmatprep.subr.mxu0 0.0
    %558 = vmatpush1.msra.mxu0 0.0
    %559 = vmatprep.subr.mxu0 0.0
    %560 = vmatpush1.msra.mxu0 0.0
    %561 = vmatprep.subr.mxu0 0.0
    %562 = vmatpush1.msra.mxu0 0.0
    %563 = vmatprep.subr.mxu0 0.0
    %564 = vmatpush1.msra.mxu0 0.0
    %565 = vmatprep.subr.mxu0 0.0
    %566 = vmatpush1.msra.mxu0 0.0
    %567 = vmatprep.subr.mxu0 0.0
    %568 = vmatpush1.msra.mxu0 0.0
    %569 = vmatprep.subr.mxu0 0.0
    %570 = vmatpush1.msra.mxu0 0.0
    %571 = vmatprep.subr.mxu0 0.0
    %572 = vmatpush1.msra.mxu0 0.0
    %573 = vmatprep.subr.mxu0 0.0
    %574 = vmatpush1.msra.mxu0 0.0
    %575 = vmatprep.subr.mxu0 0.0
    %576 = vmatpush1.msra.mxu0 0.0
    %577 = vmatprep.subr.mxu0 0.0
    %578 = vmatpush1.msra.mxu0 0.0
    %579 = vmatprep.subr.mxu0 0.0
    %580 = vmatpush1.msra.mxu0 0.0
    %581 = vmatprep.subr.mxu0 0.0
    %582 = vmatpush1.msra.mxu0 0.0
    %583 = vmatprep.subr.mxu0 0.0
    %584 = vmatpush1.msra.mxu0 0.0
    %585 = vmatprep.subr.mxu0 0.0
    %586 = vmatpush1.msra.mxu0 0.0
    %587 = vmatprep.subr.mxu0 0.0
    %588 = vmatpush1.msra.mxu0 0.0
    %589 = vmatprep.mubr.f32.mxu0 0.0
    %590 = vmatmul.mubr.f32.gmra.mrb[0].mxu0 %v501
    %v591 = vpop.f32.mrb[0].mxu0
    %v592 = vadd.f32 %v523, %v591
    %v593 = vpop.f32.mrb[0].mxu0
    %594 = vdwg.mxu0
    %v595 = vld [vmem:[%s7] sm:$0x1]
    %v596 = vld [vmem:[%s8] sm:$0x1]
    %v597 = vrot.slane %v592, 4
    %v598 = vadd.f32 %v592, %v597
    %v599 = vrot.slane %v598, 2
    %v600 = vadd.f32 %v598, %v599
    %v601 = vrot.slane %v600, 1
    %v602 = vadd.f32 %v600, %v601
    %v603 = vmul.f32 %v602, %v471
    %v604 = vsub.f32 %v592, %v603
    %v605 = vmul.f32 %v604, %v604
    %v606 = vrot.slane %v605, 4
    %v607 = vadd.f32 %v605, %v606
    %v608 = vrot.slane %v607, 2
    %v609 = vadd.f32 %v607, %v608
    %v610 = vrot.slane %v609, 1
    %v611 = vadd.f32 %v609, %v610
    %v612 = vmul.f32 %v611, %v471
    %v613 = vadd.f32 %v612, 1e-05
    %v614 = vrsqrt.pop %v613
    %v615 = vmul.f32 %v604, %v614
    %v617 = vlaneseq
    %v618 = vshrl.u32 %v617, 7
    %v619 = vsub.s32 0, %v618
    %v620 = vrot.slane %v595, %v619
    %v622 = vmul.f32 %v615, %v620
    %v624 = vlaneseq
    %v625 = vshrl.u32 %v624, 7
    %v626 = vsub.s32 0, %v625
    %v627 = vrot.slane %v596, %v626
    %v629 = vadd.f32 %v622, %v627
    %vm630 = vcmp.ge.f32.partialorder %v629, 0.0
    %v631 = vmul.f32 %v629, 0.01
    %v632 = vsel %vm630, %v629, %v631
    %v633 = vld [vmem:[#allocation5] sm:$0xff]
    %v634 = vld [vmem:[#allocation5 + $0x8] sm:$0xff]
    %v635 = vld [vmem:[#allocation5 + $0x10] sm:$0xff]
    %v636 = vld [vmem:[#allocation5 + $0x18] sm:$0xff]
    %v637 = vld [vmem:[#allocation5 + $0x20] sm:$0xff]
    %v638 = vld [vmem:[#allocation5 + $0x28] sm:$0xff]
    %v639 = vld [vmem:[#allocation5 + $0x30] sm:$0xff]
    %v640 = vld [vmem:[#allocation5 + $0x38] sm:$0xff]
    %v641 = vld [vmem:[#allocation5 + $0x40] sm:$0xff]
    %v642 = vld [vmem:[#allocation5 + $0x48] sm:$0xff]
    %v643 = vld [vmem:[#allocation5 + $0x50] sm:$0xff]
    %v644 = vld [vmem:[#allocation5 + $0x58] sm:$0xff]
    %v645 = vld [vmem:[#allocation5 + $0x60] sm:$0xff]
    %v646 = vld [vmem:[#allocation5 + $0x68] sm:$0xff]
    %v647 = vld [vmem:[#allocation5 + $0x70] sm:$0xff]
    %v648 = vld [vmem:[#allocation5 + $0x78] sm:$0xff]
    %v649 = vld [vmem:[%s10] sm:$0x1]
    %v651 = vlaneseq
    %v652 = vshrl.u32 %v651, 7
    %v653 = vsub.s32 0, %v652
    %v654 = vrot.slane %v649, %v653
    %656 = vmatprep.subr.mxu0 0.0
    %657 = vmatpush1.msra.mxu0 %v633
    %658 = vmatprep.subr.mxu0 0.0
    %659 = vmatpush1.msra.mxu0 %v634
    %660 = vmatprep.subr.mxu0 0.0
    %661 = vmatpush1.msra.mxu0 %v635
    %662 = vmatprep.subr.mxu0 0.0
    %663 = vmatpush1.msra.mxu0 %v636
    %664 = vmatprep.subr.mxu0 0.0
    %665 = vmatpush1.msra.mxu0 %v637
    %666 = vmatprep.subr.mxu0 0.0
    %667 = vmatpush1.msra.mxu0 %v638
    %668 = vmatprep.subr.mxu0 0.0
    %669 = vmatpush1.msra.mxu0 %v639
    %670 = vmatprep.subr.mxu0 0.0
    %671 = vmatpush1.msra.mxu0 %v640
    %672 = vmatprep.subr.mxu0 0.0
    %673 = vmatpush1.msra.mxu0 %v641
    %674 = vmatprep.subr.mxu0 0.0
    %675 = vmatpush1.msra.mxu0 %v642
    %676 = vmatprep.subr.mxu0 0.0
    %677 = vmatpush1.msra.mxu0 %v643
    %678 = vmatprep.subr.mxu0 0.0
    %679 = vmatpush1.msra.mxu0 %v644
    %680 = vmatprep.subr.mxu0 0.0
    %681 = vmatpush1.msra.mxu0 %v645
    %682 = vmatprep.subr.mxu0 0.0
    %683 = vmatpush1.msra.mxu0 %v646
    %684 = vmatprep.subr.mxu0 0.0
    %685 = vmatpush1.msra.mxu0 %v647
    %686 = vmatprep.subr.mxu0 0.0
    %687 = vmatpush1.msra.mxu0 %v648
    %688 = vmatprep.subr.mxu0 0.0
    %689 = vmatpush1.msra.mxu0 0.0
    %690 = vmatprep.subr.mxu0 0.0
    %691 = vmatpush1.msra.mxu0 0.0
    %692 = vmatprep.subr.mxu0 0.0
    %693 = vmatpush1.msra.mxu0 0.0
    %694 = vmatprep.subr.mxu0 0.0
    %695 = vmatpush1.msra.mxu0 0.0
    %696 = vmatprep.subr.mxu0 0.0
    %697 = vmatpush1.msra.mxu0 0.0
    %698 = vmatprep.subr.mxu0 0.0
    %699 = vmatpush1.msra.mxu0 0.0
    %700 = vmatprep.subr.mxu0 0.0
    %701 = vmatpush1.msra.mxu0 0.0
    %702 = vmatprep.subr.mxu0 0.0
    %703 = vmatpush1.msra.mxu0 0.0
    %704 = vmatprep.subr.mxu0 0.0
    %705 = vmatpush1.msra.mxu0 0.0
    %706 = vmatprep.subr.mxu0 0.0
    %707 = vmatpush1.msra.mxu0 0.0
    %708 = vmatprep.subr.mxu0 0.0
    %709 = vmatpush1.msra.mxu0 0.0
    %710 = vmatprep.subr.mxu0 0.0
    %711 = vmatpush1.msra.mxu0 0.0
    %712 = vmatprep.subr.mxu0 0.0
    %713 = vmatpush1.msra.mxu0 0.0
    %714 = vmatprep.subr.mxu0 0.0
    %715 = vmatpush1.msra.mxu0 0.0
    %716 = vmatprep.subr.mxu0 0.0
    %717 = vmatpush1.msra.mxu0 0.0
    %718 = vmatprep.subr.mxu0 0.0
    %719 = vmatpush1.msra.mxu0 0.0
    %720 = vmatprep.mubr.f32.mxu0 0.0
    %721 = vmatmul.mubr.f32.gmra.mrb[0].mxu0 %v632
    %v722 = vpop.f32.mrb[0].mxu0
    %v723 = vadd.f32 %v654, %v722
    %v724 = vpop.f32.mrb[0].mxu0
    %725 = vdwg.mxu0
    %726 = vst [vmem:[#allocation7] sm:$0xff] %v723
    // Predicated region
    $region54: #{model_11_forward.1} parent=1 // pred_check
      _
    $region55: #{model_11_forward.1} parent=1 // pred_check_branch
      %728 = sbr.rel (0) target = $region57
    $region56: #{model_11_forward.1} parent=1 // pred_region
      %s730 = ssub.s32 128, 128
      %731 = vsyncadd [#allocation4], %s730
      %s733 = sshll.u32 [#allocation7], 4
      %s734 = int_to_ptr.vmem [resolvable:$true] %s733
      %736 = dma.vmem_to_hbm [thread:$0]  %s734, 128, %s11, [#allocation4]
    $region57: #{model_11_forward.1} parent=1 // pred_fallthru
      _
    // Predicated region
    $region58: #{model_11_forward.1} parent=1 // pred_check
      _
    $region59: #{model_11_forward.1} parent=1 // pred_check_branch
      %738 = sbr.rel (0) target = $region61
    $region60: #{model_11_forward.1} parent=1 // pred_region
      %739 = dma.done [#allocation4], 128
    $region61: #{model_11_forward.1} parent=1 // pred_fallthru
      _
    %740 = vsyncpa [#allocation3], 1
    %741 = vsyncpa [#allocation6], 1
    %742 = vsyncpa [#allocation4], 1

</llo_original>
